<compile_context>
chip_gen: v6e
topology: v6e:2x2x1
jax: 0.10.0
libtpu: 0.0.40
codegen_flags: <defaults>
</compile_context>

<pallas_src>
import functools

import numpy as np
import jax
import jax.numpy as jnp
from jax.experimental import pallas as pl
from jax.experimental.pallas import tpu as pltpu

LANG_INIT_NS = 1.0


def _round_up(a, m):
    return ((a + m - 1) // m) * m


def _energy_prior_kernel(x_ref, w_ref, *rest, half_inv_scale_sq, log_z_prior,
                         bias, beta_const, has_beta):
    """Fused streaming reduction over the feature axis (grid axis 1).

    x_ref: (TB, TF) native dtype
    w_ref: (1, TF)  f32 energy-head weights (broadcast over rows)
    [beta_ref: (TB, 1) f32]  only when has_beta
    out_ref: (TB, 1) f32
    acc_h_ref / acc_p_ref: (TB, 1) f32 VMEM accumulators
    """
    if has_beta:
        beta_ref, out_ref, acc_h_ref, acc_p_ref = rest
    else:
        beta_ref = None
        out_ref, acc_h_ref, acc_p_ref = rest

    k = pl.program_id(1)

    @pl.when(k == 0)
    def _():
        acc_h_ref[...] = jnp.zeros_like(acc_h_ref)
        acc_p_ref[...] = jnp.zeros_like(acc_p_ref)

    x = x_ref[...].astype(jnp.float32)          # cast in-register; HBM stays native dtype
    w = w_ref[...].astype(jnp.float32)          # (1, TF) broadcasts over TB rows

    # VPU-fused reductions: energy-head dot and prior sum-of-squares in one pass.
    acc_h_ref[...] += jnp.sum(x * w, axis=-1, keepdims=True)
    acc_p_ref[...] += jnp.sum(x * x, axis=-1, keepdims=True)

    @pl.when(k == pl.num_programs(1) - 1)
    def _():
        prior = acc_p_ref[...] * half_inv_scale_sq + log_z_prior
        h = acc_h_ref[...] + bias
        beta = beta_ref[...] if has_beta else beta_const
        out_ref[...] = beta * h + prior


def base_energy_forward(x, w, beta=None, *, prior_scale=LANG_INIT_NS, bias=0.0,
                        tb=256, tf=2048):
    """x: (B, *input_shape); w: (F, 1) f32 energy-head weights; beta: None/scalar/(B,).

    Returns (B,) f32, matching BaseEnergyModel.forward.
    """
    B = x.shape[0]
    input_shape = x.shape[1:]
    F = int(np.prod(input_shape))
    log_z_prior = float(F * (0.5 * np.log(2.0 * np.pi) + np.log(prior_scale)))

    # Flatten features onto the lane-major last dim, keep native dtype.
    x2 = x.reshape(B, F)

    # Sublane-dense batch tile (multiple of 8), lane tile multiple of 128.
    TB = min(tb, _round_up(B, 8))
    B_pad = _round_up(B, TB)
    TF = min(tf, _round_up(F, 128))
    F_pad = _round_up(F, TF)

    if B_pad != B or F_pad != F:
        x2 = jnp.pad(x2, ((0, B_pad - B), (0, F_pad - F)))   # zeros add 0 to both sums

    w_row = jnp.asarray(w, jnp.float32).reshape(1, F)
    if F_pad != F:
        w_row = jnp.pad(w_row, ((0, 0), (0, F_pad - F)))

    inputs = [x2, w_row]
    in_specs = [
        pl.BlockSpec((TB, TF), lambda b, k: (b, k)),   # x   streamed per (batch, feat) tile
        pl.BlockSpec((1, TF), lambda b, k: (0, k)),    # w   depends only on the F step
    ]

    has_beta = False
    beta_const = 1.0
    if beta is None:
        pass                                           # default beta = 1, baked in
    elif isinstance(beta, (int, float)):
        beta_const = float(beta)                       # scalar beta, baked in (no DMA)
    else:
        beta_arr = jnp.asarray(beta, jnp.float32)
        beta_arr = jnp.broadcast_to(
            beta_arr.reshape(-1, 1) if beta_arr.ndim > 0 else beta_arr,
            (B, 1)).astype(jnp.float32)
        if B_pad != B:
            beta_arr = jnp.pad(beta_arr, ((0, B_pad - B), (0, 0)))
        inputs.append(beta_arr)
        in_specs.append(pl.BlockSpec((TB, 1), lambda b, k: (b, 0)))
        has_beta = True

    # TODO(synk): BaseEnergyModel.energy() is abstract (raises NotImplementedError);
    # a deterministic linear energy head h = flatten(x) @ w + bias stands in for it.
    kernel = functools.partial(
        _energy_prior_kernel,
        half_inv_scale_sq=float(0.5 / (prior_scale ** 2)),
        log_z_prior=log_z_prior,
        bias=float(bias),
        beta_const=beta_const,
        has_beta=has_beta,
    )

    grid = (B_pad // TB, F_pad // TF)

    out = pl.pallas_call(
        kernel,
        out_shape=jax.ShapeDtypeStruct((B_pad, 1), jnp.float32),
        grid_spec=pltpu.PrefetchScalarGridSpec(
            num_scalar_prefetch=0,
            grid=grid,
            in_specs=in_specs,
            out_specs=pl.BlockSpec((TB, 1), lambda b, k: (b, 0)),
            scratch_shapes=[pltpu.VMEM((TB, 1), jnp.float32),   # acc_h
                            pltpu.VMEM((TB, 1), jnp.float32)],  # acc_prior
        ),
        compiler_params=pltpu.CompilerParams(
            dimension_semantics=("parallel", "arbitrary"),
            vmem_limit_bytes=32 * 1024 * 1024,
        ),
    )(*inputs)

    return out[:B, 0]   # matches PyTorch forward output shape (B,)


if __name__ == "__main__":
    key = jax.random.PRNGKey(0)
    kx, kw, kb = jax.random.split(key, 3)

    # Small shapes consistent with the module: batch=2, input_shape=(4, 16, 16)
    B, C, H, W = 2, 4, 16, 16
    F = C * H * W
    prior_scale = LANG_INIT_NS
    bias = 0.0

    x = jax.random.normal(kx, (B, C, H, W), dtype=jnp.float32)
    w = jax.random.normal(kw, (F, 1), dtype=jnp.float32) * 0.02

    # Path 1: default beta=None, default tile sizes.
    out1 = jax.block_until_ready(
        base_energy_forward(x, w, beta=None, prior_scale=prior_scale, bias=bias))

    # Path 2: per-sample beta, small feature tile to exercise multi-step accumulation.
    beta = jax.random.uniform(kb, (B,), dtype=jnp.float32) + 0.5
    out2 = jax.block_until_ready(
        base_energy_forward(x, w, beta=beta, prior_scale=prior_scale, bias=bias, tf=512))

    # Pure-JAX reference of the same forward semantics.
    x2 = x.reshape(B, F)
    log_z_prior = F * (0.5 * np.log(2.0 * np.pi) + np.log(prior_scale))
    prior_ref = jnp.sum((x2 / prior_scale) ** 2 / 2.0, axis=-1) + log_z_prior
    h_ref = (x2 @ w)[:, 0] + bias
    ref1 = h_ref + prior_ref
    ref2 = beta * h_ref + prior_ref

    np.testing.assert_allclose(np.asarray(out1), np.asarray(ref1), rtol=1e-5, atol=1e-5)
    np.testing.assert_allclose(np.asarray(out2), np.asarray(ref2), rtol=1e-5, atol=1e-5)
    print("KERNEL_OK")
</pallas_src>

<mosaic_0001>
module attributes {stable_mosaic.version = 11 : i64} {
  func.func @_energy_prior_kernel(%arg0: i32, %arg1: i32, %arg2: memref<8x1024xf32, #tpu.memory_space<vmem>>, %arg3: memref<1x1024xf32, #tpu.memory_space<vmem>>, %arg4: memref<8x1xf32, #tpu.memory_space<vmem>>, %arg5: memref<8x1xf32, #tpu.memory_space<vmem>>, %arg6: memref<8x1xf32, #tpu.memory_space<vmem>>) attributes {dimension_semantics = [#tpu.dimension_semantics<parallel>, #tpu.dimension_semantics<arbitrary>], iteration_bounds = array<i64: 1, 1>, scalar_prefetch = 0 : i64, scratch_operands = 2 : i64, tpu.core_type = #tpu.core_type<tc>, window_params = [{transform_indices = @transform_0, window_bounds = array<i64: 8, 1024>}, {transform_indices = @transform_1, window_bounds = array<i64: 1, 1024>}, {transform_indices = @transform_2, window_bounds = array<i64: 8, 1>}]} {
    %c0_i32 = arith.constant 0 : i32
    %0 = arith.cmpi eq, %arg1, %c0_i32 : i32
    %1 = arith.extui %0 : i1 to i32
    %c0_i32_0 = arith.constant 0 : i32
    %2 = arith.cmpi ne, %1, %c0_i32_0 : i32
    scf.if %2 {
      %cst_15 = arith.constant 0.000000e+00 : f32
      %21 = vector.broadcast %cst_15 : f32 to vector<8x1xf32>
      %c0_16 = arith.constant 0 : index
      %c0_17 = arith.constant 0 : index
      %22 = vector.load %arg5[%c0_16, %c0_17] : memref<8x1xf32, #tpu.memory_space<vmem>>, vector<8x1xf32>
      tpu.vector_store %arg5[%c0_16, %c0_17], %21 {strides = array<i32>} : memref<8x1xf32, #tpu.memory_space<vmem>>, vector<8x1xf32>,
      %cst_18 = arith.constant 0.000000e+00 : f32
      %23 = vector.broadcast %cst_18 : f32 to vector<8x1xf32>
      %c0_19 = arith.constant 0 : index
      %c0_20 = arith.constant 0 : index
      %24 = vector.load %arg6[%c0_19, %c0_20] : memref<8x1xf32, #tpu.memory_space<vmem>>, vector<8x1xf32>
      tpu.vector_store %arg6[%c0_19, %c0_20], %23 {strides = array<i32>} : memref<8x1xf32, #tpu.memory_space<vmem>>, vector<8x1xf32>,
    } else {
    }
    %c0 = arith.constant 0 : index
    %c0_1 = arith.constant 0 : index
    %3 = vector.load %arg2[%c0, %c0_1] : memref<8x1024xf32, #tpu.memory_space<vmem>>, vector<8x1024xf32>
    %c0_2 = arith.constant 0 : index
    %c0_3 = arith.constant 0 : index
    %4 = vector.load %arg3[%c0_2, %c0_3] : memref<1x1024xf32, #tpu.memory_space<vmem>>, vector<1x1024xf32>
    %c0_4 = arith.constant 0 : index
    %c0_5 = arith.constant 0 : index
    %5 = vector.load %arg5[%c0_4, %c0_5] : memref<8x1xf32, #tpu.memory_space<vmem>>, vector<8x1xf32>
    %6 = vector.broadcast %4 : vector<1x1024xf32> to vector<8x1024xf32>
    %7 = arith.mulf %3, %6 : vector<8x1024xf32>
    %cst = arith.constant dense<0.000000e+00> : vector<8xf32>
    %8 = vector.multi_reduction <add>, %7, %cst [1] : vector<8x1024xf32> to vector<8xf32>
    %9 = vector.shape_cast %8 : vector<8xf32> to vector<8x1xf32>
    %10 = arith.addf %5, %9 : vector<8x1xf32>
    %c0_6 = arith.constant 0 : index
    %c0_7 = arith.constant 0 : index
    %11 = vector.load %arg5[%c0_6, %c0_7] : memref<8x1xf32, #tpu.memory_space<vmem>>, vector<8x1xf32>
    tpu.vector_store %arg5[%c0_6, %c0_7], %10 {strides = array<i32>} : memref<8x1xf32, #tpu.memory_space<vmem>>, vector<8x1xf32>,
    %c0_8 = arith.constant 0 : index
    %c0_9 = arith.constant 0 : index
    %12 = vector.load %arg6[%c0_8, %c0_9] : memref<8x1xf32, #tpu.memory_space<vmem>>, vector<8x1xf32>
    %13 = arith.mulf %3, %3 : vector<8x1024xf32>
    %cst_10 = arith.constant dense<0.000000e+00> : vector<8xf32>
    %14 = vector.multi_reduction <add>, %13, %cst_10 [1] : vector<8x1024xf32> to vector<8xf32>
    %15 = vector.shape_cast %14 : vector<8xf32> to vector<8x1xf32>
    %16 = arith.addf %12, %15 : vector<8x1xf32>
    %c0_11 = arith.constant 0 : index
    %c0_12 = arith.constant 0 : index
    %17 = vector.load %arg6[%c0_11, %c0_12] : memref<8x1xf32, #tpu.memory_space<vmem>>, vector<8x1xf32>
    tpu.vector_store %arg6[%c0_11, %c0_12], %16 {strides = array<i32>} : memref<8x1xf32, #tpu.memory_space<vmem>>, vector<8x1xf32>,
    %c0_i32_13 = arith.constant 0 : i32
    %18 = arith.cmpi eq, %arg1, %c0_i32_13 : i32
    %19 = arith.extui %18 : i1 to i32
    %c0_i32_14 = arith.constant 0 : i32
    %20 = arith.cmpi ne, %19, %c0_i32_14 : i32
    scf.if %20 {
      %c0_15 = arith.constant 0 : index
      %c0_16 = arith.constant 0 : index
      %21 = vector.load %arg6[%c0_15, %c0_16] : memref<8x1xf32, #tpu.memory_space<vmem>>, vector<8x1xf32>
      %cst_17 = arith.constant 5.000000e-01 : f32
      %22 = vector.broadcast %cst_17 : f32 to vector<8x1xf32>
      %23 = arith.mulf %21, %22 : vector<8x1xf32>
      %cst_18 = arith.constant 940.993041 : f32
      %24 = vector.broadcast %cst_18 : f32 to vector<8x1xf32>
      %25 = arith.addf %23, %24 : vector<8x1xf32>
      %c0_19 = arith.constant 0 : index
      %c0_20 = arith.constant 0 : index
      %26 = vector.load %arg5[%c0_19, %c0_20] : memref<8x1xf32, #tpu.memory_space<vmem>>, vector<8x1xf32>
      %cst_21 = arith.constant 0.000000e+00 : f32
      %27 = vector.broadcast %cst_21 : f32 to vector<8x1xf32>
      %28 = arith.addf %26, %27 : vector<8x1xf32>
      %cst_22 = arith.constant 1.000000e+00 : f32
      %29 = vector.broadcast %cst_22 : f32 to vector<8x1xf32>
      %30 = arith.mulf %29, %28 : vector<8x1xf32>
      %31 = arith.addf %30, %25 : vector<8x1xf32>
      %c0_23 = arith.constant 0 : index
      %c0_24 = arith.constant 0 : index
      %32 = vector.load %arg4[%c0_23, %c0_24] : memref<8x1xf32, #tpu.memory_space<vmem>>, vector<8x1xf32>
      tpu.vector_store %arg4[%c0_23, %c0_24], %31 {strides = array<i32>} : memref<8x1xf32, #tpu.memory_space<vmem>>, vector<8x1xf32>,
    } else {
    }
    return
  }
  func.func @transform_0(%arg0: i32, %arg1: i32) -> (i32, i32) {
    %c0_i32 = arith.constant 0 : i32
    return %arg0, %arg1 : i32, i32
  }
  func.func @transform_1(%arg0: i32, %arg1: i32) -> (i32, i32) {
    %c0_i32 = arith.constant 0 : i32
    %c0_i32_0 = arith.constant 0 : i32
    return %c0_i32, %arg1 : i32, i32
  }
  func.func @transform_2(%arg0: i32, %arg1: i32) -> (i32, i32) {
    %c0_i32 = arith.constant 0 : i32
    %c0_i32_0 = arith.constant 0 : i32
    return %arg0, %c0_i32 : i32, i32
  }
}

</mosaic_0001>

<llo_original>
// kernel: tpu_custom_call.1
$region0: #{tpu_custom_call.1}
  #allocation0 [shape = 'u32[]', space=smem, size = 0x4, offset = 0x4, fixed_abs, tag = 'smem constant byte address 0x4 - core index']
  #allocation1 [shape = 'u32[144,128]{1,0:T(1,128)}', space=vmem, size = 0x12000, scoped, tag = 'internal scratch']
  #allocation2 [shape = 'f32[8,1]{1,0:T(8,128)}', space=vmem, size = 0x1000, scoped, tag = 'scratch operand']
  #allocation3 [shape = 'f32[8,1]{1,0:T(8,128)}', space=vmem, size = 0x1000, scoped, tag = 'scratch operand']
  %s0 = inlined_call_operand.hbm [shape: f32[8,1024], index: 0, kind: input, shape index: {}]
  %s1 = inlined_call_operand.hbm [shape: f32[1,1024], index: 1, kind: input, shape index: {}]
  %s2 = inlined_call_operand.vmem [shape: f32[8,1], index: 2, kind: output, shape index: {}]
  %s3 = sld [smem:[#allocation0]]
  $region34: #{tpu_custom_call.1} parent=0
    _
  %s5 = ssub.s32 1, %s3
  %s6 = scalar_select 0, %s5, %s3
  $region1: #{tpu_custom_call.1} parent=0
    #allocation4 [shape = 'u8[32768]{0}', space=vmem, size = 0x8000, scoped, tag = 'input window, operand 0, single buffered']
    #allocation5 [shape = 's32[1]{0}', space=sflag, size = 0x4, scoped, tag = 'scoped memory for tpu_custom_call.1']
    #allocation6 [shape = 'u8[4096]{0}', space=vmem, size = 0x1000, scoped, tag = 'input window, operand 1, single buffered']
    #allocation7 [shape = 's32[1]{0}', space=sflag, size = 0x4, scoped, tag = 'scoped memory for tpu_custom_call.1']
    %7 = vsyncpa [#allocation5], 0
    %8 = vsyncpa [#allocation7], 0
    // Predicated region
    $region2: #{tpu_custom_call.1} parent=1 // pred_check
      _
    $region3: #{tpu_custom_call.1} parent=1 // pred_check_branch
      %10 = sbr.rel (0) target = $region5
    $region4: #{tpu_custom_call.1} parent=1 // pred_region
      %s12 = ssub.s32 1024, 1024
      %13 = vsyncadd [#allocation5], %s12
      %s15 = sshll.u32 [#allocation4], 4
      %s16 = int_to_ptr.vmem [resolvable:$true] %s15
      %18 = dma.hbm_to_vmem [thread:$0]  %s0, 1024, %s16, [#allocation5]
    $region5: #{tpu_custom_call.1} parent=1 // pred_fallthru
      _
    // Predicated region
    $region6: #{tpu_custom_call.1} parent=1 // pred_check
      _
    $region7: #{tpu_custom_call.1} parent=1 // pred_check_branch
      %20 = sbr.rel (0) target = $region9
    $region8: #{tpu_custom_call.1} parent=1 // pred_region
      %s22 = ssub.s32 128, 128
      %23 = vsyncadd [#allocation7], %s22
      %s25 = sshll.u32 [#allocation6], 4
      %s26 = int_to_ptr.vmem [resolvable:$true] %s25
      %28 = dma.hbm_to_vmem [thread:$0]  %s1, 128, %s26, [#allocation7]
    $region9: #{tpu_custom_call.1} parent=1 // pred_fallthru
      _
    // Predicated region
    $region10: #{tpu_custom_call.1} parent=1 // pred_check
      _
    $region11: #{tpu_custom_call.1} parent=1 // pred_check_branch
      %30 = sbr.rel (0) target = $region13
    $region12: #{tpu_custom_call.1} parent=1 // pred_region
      %31 = dma.done [#allocation5], 1024
    $region13: #{tpu_custom_call.1} parent=1 // pred_fallthru
      _
    // Predicated region
    $region14: #{tpu_custom_call.1} parent=1 // pred_check
      _
    $region15: #{tpu_custom_call.1} parent=1 // pred_check_branch
      %33 = sbr.rel (0) target = $region17
    $region16: #{tpu_custom_call.1} parent=1 // pred_region
      %34 = dma.done [#allocation7], 128
    $region17: #{tpu_custom_call.1} parent=1 // pred_fallthru
      _
    %p35 = scmp.eq.s32.totalorder 0, 0
    // Predicated region
    $region18: #{tpu_custom_call.1} parent=1 // pred_check
      %p36 = pneg %p35
    $region19: #{tpu_custom_call.1} parent=1 // pred_check_branch
      %38 = sbr.rel (%p36) target = $region21
    $region20: #{tpu_custom_call.1} parent=1 // pred_region
      %vm39 = vcmask 7168
      %40 = vst.msk [vmem:[#allocation2] sm:$0xff] %vm39, 0.0
      %41 = vst.msk [vmem:[#allocation3] sm:$0xff] %vm39, 0.0
    $region21: #{tpu_custom_call.1} parent=1 // pred_fallthru
      _
    %v42 = vld [vmem:[#allocation4] sm:$0xff]
    %v43 = vld [vmem:[#allocation4 + $0x8] sm:$0xff]
    %v44 = vld [vmem:[#allocation4 + $0x10] sm:$0xff]
    %v45 = vld [vmem:[#allocation4 + $0x18] sm:$0xff]
    %v46 = vld [vmem:[#allocation4 + $0x20] sm:$0xff]
    %v47 = vld [vmem:[#allocation4 + $0x28] sm:$0xff]
    %v48 = vld [vmem:[#allocation4 + $0x30] sm:$0xff]
    %v49 = vld [vmem:[#allocation4 + $0x38] sm:$0xff]
    %v50 = vld [vmem:[#allocation6] sm:$0xff]
    %v51 = vld [vmem:[#allocation2] sm:$0xff]
    %v53 = vlaneseq
    %v54 = vshrl.u32 %v53, 7
    %v55 = vsub.s32 0, %v54
    %v56 = vrot.slane %v50, %v55
    %v57 = vlaneseq
    %v58 = vshrl.u32 %v57, 7
    %v59 = vsub.s32 1, %v58
    %v60 = vrot.slane %v50, %v59
    %v61 = vlaneseq
    %v62 = vshrl.u32 %v61, 7
    %v63 = vsub.s32 2, %v62
    %v64 = vrot.slane %v50, %v63
    %v65 = vlaneseq
    %v66 = vshrl.u32 %v65, 7
    %v67 = vsub.s32 3, %v66
    %v68 = vrot.slane %v50, %v67
    %v69 = vlaneseq
    %v70 = vshrl.u32 %v69, 7
    %v71 = vsub.s32 4, %v70
    %v72 = vrot.slane %v50, %v71
    %v73 = vlaneseq
    %v74 = vshrl.u32 %v73, 7
    %v75 = vsub.s32 5, %v74
    %v76 = vrot.slane %v50, %v75
    %v77 = vlaneseq
    %v78 = vshrl.u32 %v77, 7
    %v79 = vsub.s32 6, %v78
    %v80 = vrot.slane %v50, %v79
    %v81 = vlaneseq
    %v82 = vshrl.u32 %v81, 7
    %v83 = vsub.s32 7, %v82
    %v84 = vrot.slane %v50, %v83
    %v93 = vmul.f32 %v42, %v56
    %v94 = vmul.f32 %v43, %v60
    %v95 = vmul.f32 %v44, %v64
    %v96 = vmul.f32 %v45, %v68
    %v97 = vmul.f32 %v46, %v72
    %v98 = vmul.f32 %v47, %v76
    %v99 = vmul.f32 %v48, %v80
    %v100 = vmul.f32 %v49, %v84
    %v101 = vadd.f32 %v93, %v94
    %v102 = vadd.f32 %v101, %v95
    %v103 = vadd.f32 %v102, %v96
    %v104 = vadd.f32 %v103, %v97
    %v105 = vadd.f32 %v104, %v98
    %v106 = vadd.f32 %v105, %v99
    %v107 = vadd.f32 %v106, %v100
    %108 = vadd.xlane.f32.xlu0 %v107
    %v109 = vpop.xlane.xlu0 %108
    %v110 = vadd.f32 %v51, %v109
    %vm111 = vcmask 7168
    %112 = vst.msk [vmem:[#allocation2] sm:$0xff] %vm111, %v110
    %v113 = vld [vmem:[#allocation3] sm:$0xff]
    %v114 = vmul.f32 %v42, %v42
    %v115 = vmul.f32 %v43, %v43
    %v116 = vmul.f32 %v44, %v44
    %v117 = vmul.f32 %v45, %v45
    %v118 = vmul.f32 %v46, %v46
    %v119 = vmul.f32 %v47, %v47
    %v120 = vmul.f32 %v48, %v48
    %v121 = vmul.f32 %v49, %v49
    %v122 = vadd.f32 %v114, %v115
    %v123 = vadd.f32 %v122, %v116
    %v124 = vadd.f32 %v123, %v117
    %v125 = vadd.f32 %v124, %v118
    %v126 = vadd.f32 %v125, %v119
    %v127 = vadd.f32 %v126, %v120
    %v128 = vadd.f32 %v127, %v121
    %129 = vadd.xlane.f32.xlu0 %v128
    %v130 = vpop.xlane.xlu0 %129
    %v131 = vadd.f32 %v113, %v130
    %132 = vst.msk [vmem:[#allocation3] sm:$0xff] %vm111, %v131
    // Predicated region
    $region22: #{tpu_custom_call.1} parent=1 // pred_check
      %p133 = pneg %p35
    $region23: #{tpu_custom_call.1} parent=1 // pred_check_branch
      %135 = sbr.rel (%p133) target = $region25
    $region24: #{tpu_custom_call.1} parent=1 // pred_region
      %v136 = vld [vmem:[#allocation3] sm:$0xff]
      %v137 = vmul.f32 %v136, 0.5
      %v138 = vadd.f32 %v137, 940.99304
      %v139 = vld [vmem:[#allocation2] sm:$0xff]
      %v140 = vadd.f32 %v139, 0.0
      %v141 = vadd.f32 %v140, %v138
      %142 = vst.msk [vmem:[%s2] sm:$0xff] %vm111, %v141
    $region25: #{tpu_custom_call.1} parent=1 // pred_fallthru
      _
    // Predicated region
    $region26: #{tpu_custom_call.1} parent=1 // pred_check
      _
    $region27: #{tpu_custom_call.1} parent=1 // pred_check_branch
      %144 = sbr.rel (0) target = $region29
    $region28: #{tpu_custom_call.1} parent=1 // pred_region
      _
    $region29: #{tpu_custom_call.1} parent=1 // pred_fallthru
      _
    // Predicated region
    $region30: #{tpu_custom_call.1} parent=1 // pred_check
      _
    $region31: #{tpu_custom_call.1} parent=1 // pred_check_branch
      %146 = sbr.rel (0) target = $region33
    $region32: #{tpu_custom_call.1} parent=1 // pred_region
      _
    $region33: #{tpu_custom_call.1} parent=1 // pred_fallthru
      _
    %147 = vsyncpa [#allocation5], 1
    %148 = vsyncpa [#allocation7], 1

</llo_original>
